<compile_context>
chip_gen: v6e
topology: v6e:2x2x1
jax: 0.10.0
libtpu: 0.0.40
codegen_flags: <defaults>
</compile_context>

<pallas_src>
import functools
import math

import jax
import jax.numpy as jnp
from jax.experimental import pallas as pl
from jax.experimental.pallas import tpu as pltpu


# ----------------------------------------------------------------------------
# helpers
# ----------------------------------------------------------------------------
def _pick_tile(dim, target, align):
    """Largest multiple of `align` that divides `dim` and is <= `target`.

    Falls back to the full dim (always a legal block size) when the dim is
    small or not a multiple of `align`, so BlockSpec (8,128) constraints are
    always satisfied.
    """
    if dim <= target or dim % align != 0:
        return dim
    t = (target // align) * align
    while t >= align:
        if dim % t == 0:
            return t
        t -= align
    return dim


# ----------------------------------------------------------------------------
# Tiled linear:  y = x @ w + b
# ----------------------------------------------------------------------------
def _linear_kernel(x_ref, w_ref, b_ref, o_ref, acc_ref, *, mxu_dtype):
    @pl.when(pl.program_id(2) == 0)
    def _():
        acc_ref[...] = jnp.zeros_like(acc_ref)

    x = x_ref[...]
    w = w_ref[...]
    if mxu_dtype is not None:
        x = x.astype(mxu_dtype)
        w = w.astype(mxu_dtype)
    acc_ref[...] += jnp.dot(x, w, preferred_element_type=jnp.float32)

    @pl.when(pl.program_id(2) == pl.num_programs(2) - 1)
    def _():
        o_ref[...] = (acc_ref[...] + b_ref[...]).astype(o_ref.dtype)


def _pallas_linear(x2d, w_t, b_row, *, tm=512, tn=512, tk=1024, mxu_bf16=False):
    """x2d: [N, d_in], w_t: [d_in, d_out] (pre-transposed), b_row: [1, d_out]."""
    n, d_in = x2d.shape
    d_out = w_t.shape[1]
    tm = _pick_tile(n, tm, 8)        # sublane dim of x / out blocks
    tn = _pick_tile(d_out, tn, 128)  # lane dim of w / b / out blocks
    tk = _pick_tile(d_in, tk, 128)   # lane dim of x block, sublane dim of w block
    itemsize = jnp.dtype(x2d.dtype).itemsize
    return pl.pallas_call(
        functools.partial(_linear_kernel,
                          mxu_dtype=jnp.bfloat16 if mxu_bf16 else None),
        out_shape=jax.ShapeDtypeStruct((n, d_out), x2d.dtype),
        grid_spec=pltpu.PrefetchScalarGridSpec(
            num_scalar_prefetch=0,
            grid=(n // tm, d_out // tn, d_in // tk),
            in_specs=[
                pl.BlockSpec((tm, tk), lambda i, j, k: (i, k)),
                pl.BlockSpec((tk, tn), lambda i, j, k: (k, j)),
                pl.BlockSpec((1, tn), lambda i, j, k: (0, j)),
            ],
            out_specs=pl.BlockSpec((tm, tn), lambda i, j, k: (i, j)),
            scratch_shapes=[pltpu.VMEM((tm, tn), jnp.float32)],
        ),
        compiler_params=pltpu.CompilerParams(
            dimension_semantics=("parallel", "parallel", "arbitrary")),
        cost_estimate=pl.CostEstimate(
            flops=2 * n * d_in * d_out,
            transcendentals=0,
            bytes_accessed=itemsize * (n * d_in + d_in * d_out + n * d_out)),
    )(x2d, w_t, b_row)


# ----------------------------------------------------------------------------
# Flash-style attention kernel: grid (B, Sq//tq, Skv//tkv), heads in-kernel.
# ----------------------------------------------------------------------------
def _flash_attn_kernel(q_ref, k_ref, v_ref, *rest, h, d_k, scale, has_mask):
    if has_mask:
        mask_ref, o_ref, m_ref, l_ref, acc_ref = rest
    else:
        o_ref, m_ref, l_ref, acc_ref = rest

    ki = pl.program_id(2)
    nk = pl.num_programs(2)

    @pl.when(ki == 0)
    def _():
        m_ref[...] = jnp.full_like(m_ref, -jnp.inf)
        l_ref[...] = jnp.zeros_like(l_ref)
        acc_ref[...] = jnp.zeros_like(acc_ref)

    neg_mask = (mask_ref[0] == 0) if has_mask else None   # (tq, tkv) bool

    q_all = q_ref[0]     # (tq,  d_model)  stored dtype
    k_all = k_ref[0]     # (tkv, d_model)
    v_all = v_ref[0]     # (tkv, d_model)

    # Unrolled head loop: head hh's exp (EUP) overlaps head hh+1's QK^T (MXU).
    for hh in range(h):
        sl = slice(hh * d_k, (hh + 1) * d_k)
        q = q_all[:, sl]
        k = k_all[:, sl]
        v = v_all[:, sl]
        # q @ k^T without materializing a transpose: contract the last dims.
        s = jax.lax.dot_general(q, k, (((1,), (1,)), ((), ())),
                                preferred_element_type=jnp.float32) * scale
        if neg_mask is not None:
            s = jnp.where(neg_mask, jnp.float32(-1e9), s)

        m_prev = m_ref[hh]                                   # (tq, 1)
        m_new = jnp.maximum(m_prev, jnp.max(s, axis=-1, keepdims=True))
        alpha = jnp.exp(m_prev - m_new)
        p = jnp.exp(s - m_new)
        l_ref[hh] = alpha * l_ref[hh] + jnp.sum(p, axis=-1, keepdims=True)
        acc_ref[:, sl] = alpha * acc_ref[:, sl] + jnp.dot(
            p.astype(v.dtype), v, preferred_element_type=jnp.float32)
        m_ref[hh] = m_new

    @pl.when(ki == nk - 1)
    def _():
        for hh in range(h):
            sl = slice(hh * d_k, (hh + 1) * d_k)
            denom = l_ref[hh]
            r = pl.reciprocal(denom, approx=True)   # EUP slot (otherwise idle)
            r = r * (2.0 - denom * r)               # one Newton step -> full f32
            acc_ref[:, sl] = acc_ref[:, sl] * r
        # single lane-dense store of all merged heads
        o_ref[0] = acc_ref[...].astype(o_ref.dtype)


# ----------------------------------------------------------------------------
# Wrapper
# ----------------------------------------------------------------------------
def prepare_params(params):
    """One-time parameter prep: transpose to [d_in, d_out]; fuse Q/K/V weights."""
    return {
        "w_qkv": jnp.concatenate(
            [params["w0"].T, params["w1"].T, params["w2"].T], axis=1),
        "b_qkv": jnp.concatenate(
            [params["b0"], params["b1"], params["b2"]]).reshape(1, -1),
        "w_q": params["w0"].T, "b_q": params["b0"].reshape(1, -1),
        "w_k": params["w1"].T, "b_k": params["b1"].reshape(1, -1),
        "w_v": params["w2"].T, "b_v": params["b2"].reshape(1, -1),
        "w_o": params["w3"].T, "b_o": params["b3"].reshape(1, -1),
    }


def multi_headed_attention(query, key, value, prepped, *, h, mask=None,
                           mxu_bf16=False):
    """Pallas implementation of MultiHeadedAttention.forward (eval mode)."""
    B, Sq, d_model = query.shape
    Skv = key.shape[1]
    assert d_model % h == 0
    d_k = d_model // h
    scale = 1.0 / math.sqrt(d_k)
    has_mask = mask is not None
    # NOTE: relies on Python object identity to detect self-attention; calling
    # with distinct-but-equal arrays just takes the (equally correct) 3-matmul path.
    fused = (query is key) and (query is value)

    # ---- projections -------------------------------------------------------
    if fused:
        qkv = _pallas_linear(query.reshape(B * Sq, d_model),
                             prepped["w_qkv"], prepped["b_qkv"],
                             mxu_bf16=mxu_bf16).reshape(B, Sq, 3 * d_model)
        if d_model % 128 == 0:
            # Consume the fused array in place: same array passed 3x, column
            # blocks 0/1/2 picked by the index maps (no HBM split copies).
            q_arr = k_arr = v_arr = qkv
            q_col, k_col, v_col = 0, 1, 2
        else:
            # Small / unaligned d_model: split once (one cheap extra HBM pass).
            q_arr = qkv[:, :, :d_model]
            k_arr = qkv[:, :, d_model:2 * d_model]
            v_arr = qkv[:, :, 2 * d_model:]
            q_col = k_col = v_col = 0
    else:
        q_arr = _pallas_linear(query.reshape(B * Sq, d_model),
                               prepped["w_q"], prepped["b_q"],
                               mxu_bf16=mxu_bf16).reshape(B, Sq, d_model)
        k_arr = _pallas_linear(key.reshape(B * Skv, d_model),
                               prepped["w_k"], prepped["b_k"],
                               mxu_bf16=mxu_bf16).reshape(B, Skv, d_model)
        v_arr = _pallas_linear(value.reshape(B * Skv, d_model),
                               prepped["w_v"], prepped["b_v"],
                               mxu_bf16=mxu_bf16).reshape(B, Skv, d_model)
        q_col = k_col = v_col = 0

    # ---- flash-style attention tiling --------------------------------------
    tq = _pick_tile(Sq, 256, 8)
    if Skv % 128 == 0:
        tkv = _pick_tile(Skv, 512, 128)
    elif has_mask:
        tkv = Skv            # mask block's lane dim must be 128-aligned or full
    else:
        tkv = _pick_tile(Skv, 512, 8)
    nq, nkv = Sq // tq, Skv // tkv

    def q_map(b, qi, ki, qc=q_col):
        return (b, qi, qc)

    def k_map(b, qi, ki, kc=k_col):
        return (b, ki, kc)

    def v_map(b, qi, ki, vc=v_col):
        return (b, ki, vc)

    def o_map(b, qi, ki):
        return (b, qi, 0)

    def mask_map(b, qi, ki):
        return (b, qi, ki)

    in_specs = [
        pl.BlockSpec((1, tq, d_model), q_map),
        pl.BlockSpec((1, tkv, d_model), k_map),
        pl.BlockSpec((1, tkv, d_model), v_map),
    ]
    attn_inputs = [q_arr, k_arr, v_arr]
    if has_mask:
        # mask == 0 -> -1e9, broadcast over heads (module's mask.unsqueeze(1)).
        mask_arr = jnp.broadcast_to(mask != 0, (B, Sq, Skv)).astype(jnp.int8)
        attn_inputs.append(mask_arr)
        in_specs.append(pl.BlockSpec((1, tq, tkv), mask_map))

    itemsize = jnp.dtype(query.dtype).itemsize
    attn_out = pl.pallas_call(
        functools.partial(_flash_attn_kernel, h=h, d_k=d_k, scale=scale,
                          has_mask=has_mask),
        out_shape=jax.ShapeDtypeStruct((B, Sq, d_model), query.dtype),
        grid_spec=pltpu.PrefetchScalarGridSpec(
            num_scalar_prefetch=0,
            grid=(B, nq, nkv),
            in_specs=in_specs,
            out_specs=pl.BlockSpec((1, tq, d_model), o_map),
            scratch_shapes=[
                pltpu.VMEM((h, tq, 1), jnp.float32),        # running max m
                pltpu.VMEM((h, tq, 1), jnp.float32),        # running denom l
                pltpu.VMEM((tq, d_model), jnp.float32),     # merged-head acc
            ],
        ),
        compiler_params=pltpu.CompilerParams(
            dimension_semantics=("parallel", "parallel", "arbitrary")),
        cost_estimate=pl.CostEstimate(
            flops=4 * B * h * Sq * Skv * d_k,
            transcendentals=B * h * Sq * Skv,
            bytes_accessed=itemsize * B * (2 * Sq * d_model
                                           + 2 * nq * Skv * d_model)
            + (B * Sq * Skv if has_mask else 0)),
    )(*attn_inputs)

    # ---- output projection --------------------------------------------------
    out = _pallas_linear(attn_out.reshape(B * Sq, d_model),
                         prepped["w_o"], prepped["b_o"], mxu_bf16=mxu_bf16)
    return out.reshape(B, Sq, d_model)


# ----------------------------------------------------------------------------
# Pure-JAX reference (mirrors the PyTorch forward exactly, eval mode)
# ----------------------------------------------------------------------------
def reference(query, key, value, params, *, h, mask=None):
    B, Sq, d_model = query.shape
    Skv = key.shape[1]
    d_k = d_model // h

    def lin(x, w, b):
        return x @ w.T + b

    def split(x, s):
        return x.reshape(B, s, h, d_k).transpose(0, 2, 1, 3)

    q = split(lin(query, params["w0"], params["b0"]), Sq)
    k = split(lin(key,   params["w1"], params["b1"]), Skv)
    v = split(lin(value, params["w2"], params["b2"]), Skv)

    scores = jnp.einsum("bhqd,bhkd->bhqk", q, k) / math.sqrt(d_k)
    if mask is not None:
        scores = jnp.where(mask.reshape(B, 1, Sq, Skv) == 0, -1e9, scores)
    p = jax.nn.softmax(scores, axis=-1)
    x = jnp.einsum("bhqk,bhkd->bhqd", p, v)
    x = x.transpose(0, 2, 1, 3).reshape(B, Sq, d_model)
    return lin(x, params["w3"], params["b3"])


# ----------------------------------------------------------------------------
# Main
# ----------------------------------------------------------------------------
if __name__ == "__main__":
    B, S, d_model, h = 2, 8, 32, 4

    key0 = jax.random.PRNGKey(0)
    keys = jax.random.split(key0, 16)

    # Deterministic nn.Linear-style init: U(-1/sqrt(in), 1/sqrt(in)).
    bound = 1.0 / math.sqrt(d_model)
    params = {}
    for i in range(4):
        params[f"w{i}"] = jax.random.uniform(
            keys[2 * i], (d_model, d_model), jnp.float32, -bound, bound)
        params[f"b{i}"] = jax.random.uniform(
            keys[2 * i + 1], (d_model,), jnp.float32, -bound, bound)
    prepped = prepare_params(params)

    x  = jax.random.normal(keys[8],  (B, S, d_model), jnp.float32)
    q2 = jax.random.normal(keys[9],  (B, S, d_model), jnp.float32)
    k2 = jax.random.normal(keys[10], (B, S, d_model), jnp.float32)
    v2 = jax.random.normal(keys[11], (B, S, d_model), jnp.float32)

    # 1) self-attention, no mask -> fused-QKV projection + no-mask kernel variant
    out1 = jax.block_until_ready(
        multi_headed_attention(x, x, x, prepped, h=h, mask=None))
    ref1 = reference(x, x, x, params, h=h, mask=None)
    assert out1.shape == (B, S, d_model)
    assert jnp.allclose(out1, ref1, atol=1e-4, rtol=1e-4), "fused path mismatch"

    # 2) cross-attention with a causal mask -> split projections + masked_fill path
    causal = jnp.broadcast_to(jnp.tril(jnp.ones((S, S), jnp.float32)), (B, S, S))
    out2 = jax.block_until_ready(
        multi_headed_attention(q2, k2, v2, prepped, h=h, mask=causal))
    ref2 = reference(q2, k2, v2, params, h=h, mask=causal)
    assert jnp.allclose(out2, ref2, atol=1e-4, rtol=1e-4), "masked path mismatch"

    print("KERNEL_OK")
</pallas_src>

<mosaic_0001>
module attributes {stable_mosaic.version = 11 : i64} {
  func.func @_linear_kernel(%arg0: i32, %arg1: i32, %arg2: i32, %arg3: memref<16x32xf32, #tpu.memory_space<vmem>>, %arg4: memref<32x96xf32, #tpu.memory_space<vmem>>, %arg5: memref<1x96xf32, #tpu.memory_space<vmem>>, %arg6: memref<16x96xf32, #tpu.memory_space<vmem>>, %arg7: memref<16x96xf32, #tpu.memory_space<vmem>>) attributes {dimension_semantics = [#tpu.dimension_semantics<parallel>, #tpu.dimension_semantics<parallel>, #tpu.dimension_semantics<arbitrary>], iteration_bounds = array<i64: 1, 1, 1>, scalar_prefetch = 0 : i64, scratch_operands = 1 : i64, tpu.core_type = #tpu.core_type<tc>, window_params = [{transform_indices = @transform_0, window_bounds = array<i64: 16, 32>}, {transform_indices = @transform_1, window_bounds = array<i64: 32, 96>}, {transform_indices = @transform_2, window_bounds = array<i64: 1, 96>}, {transform_indices = @transform_3, window_bounds = array<i64: 16, 96>}]} {
    %c0_i32 = arith.constant 0 : i32
    %0 = arith.cmpi eq, %arg2, %c0_i32 : i32
    %1 = arith.extui %0 : i1 to i32
    %c0_i32_0 = arith.constant 0 : i32
    %2 = arith.cmpi ne, %1, %c0_i32_0 : i32
    scf.if %2 {
      %cst_10 = arith.constant 0.000000e+00 : f32
      %12 = vector.broadcast %cst_10 : f32 to vector<16x96xf32>
      %c0_11 = arith.constant 0 : index
      %c0_12 = arith.constant 0 : index
      %13 = vector.load %arg7[%c0_11, %c0_12] : memref<16x96xf32, #tpu.memory_space<vmem>>, vector<16x96xf32>
      tpu.vector_store %arg7[%c0_11, %c0_12], %12 {strides = array<i32>} : memref<16x96xf32, #tpu.memory_space<vmem>>, vector<16x96xf32>,
    } else {
    }
    %c0 = arith.constant 0 : index
    %c0_1 = arith.constant 0 : index
    %3 = vector.load %arg3[%c0, %c0_1] : memref<16x32xf32, #tpu.memory_space<vmem>>, vector<16x32xf32>
    %c0_2 = arith.constant 0 : index
    %c0_3 = arith.constant 0 : index
    %4 = vector.load %arg4[%c0_2, %c0_3] : memref<32x96xf32, #tpu.memory_space<vmem>>, vector<32x96xf32>
    %c0_4 = arith.constant 0 : index
    %c0_5 = arith.constant 0 : index
    %5 = vector.load %arg7[%c0_4, %c0_5] : memref<16x96xf32, #tpu.memory_space<vmem>>, vector<16x96xf32>
    %cst = arith.constant dense<0.000000e+00> : vector<16x96xf32>
    %6 = tpu.matmul %3, %4, %cst {dimension_numbers = #tpu.dot_dimension_numbers<[1], [0], [0], [1], [0, 0, 1, 1], [], []>} : vector<16x32xf32>, vector<32x96xf32>, vector<16x96xf32> -> vector<16x96xf32>
    %7 = arith.addf %5, %6 : vector<16x96xf32>
    %c0_6 = arith.constant 0 : index
    %c0_7 = arith.constant 0 : index
    %8 = vector.load %arg7[%c0_6, %c0_7] : memref<16x96xf32, #tpu.memory_space<vmem>>, vector<16x96xf32>
    tpu.vector_store %arg7[%c0_6, %c0_7], %7 {strides = array<i32>} : memref<16x96xf32, #tpu.memory_space<vmem>>, vector<16x96xf32>,
    %c0_i32_8 = arith.constant 0 : i32
    %9 = arith.cmpi eq, %arg2, %c0_i32_8 : i32
    %10 = arith.extui %9 : i1 to i32
    %c0_i32_9 = arith.constant 0 : i32
    %11 = arith.cmpi ne, %10, %c0_i32_9 : i32
    scf.if %11 {
      %c0_10 = arith.constant 0 : index
      %c0_11 = arith.constant 0 : index
      %12 = vector.load %arg7[%c0_10, %c0_11] : memref<16x96xf32, #tpu.memory_space<vmem>>, vector<16x96xf32>
      %c0_12 = arith.constant 0 : index
      %c0_13 = arith.constant 0 : index
      %13 = vector.load %arg5[%c0_12, %c0_13] : memref<1x96xf32, #tpu.memory_space<vmem>>, vector<1x96xf32>
      %14 = vector.broadcast %13 : vector<1x96xf32> to vector<16x96xf32>
      %15 = arith.addf %12, %14 : vector<16x96xf32>
      %c0_14 = arith.constant 0 : index
      %c0_15 = arith.constant 0 : index
      %16 = vector.load %arg6[%c0_14, %c0_15] : memref<16x96xf32, #tpu.memory_space<vmem>>, vector<16x96xf32>
      tpu.vector_store %arg6[%c0_14, %c0_15], %15 {strides = array<i32>} : memref<16x96xf32, #tpu.memory_space<vmem>>, vector<16x96xf32>,
    } else {
    }
    return
  }
  func.func @transform_0(%arg0: i32, %arg1: i32, %arg2: i32) -> (i32, i32) {
    %c0_i32 = arith.constant 0 : i32
    return %arg0, %arg2 : i32, i32
  }
  func.func @transform_1(%arg0: i32, %arg1: i32, %arg2: i32) -> (i32, i32) {
    %c0_i32 = arith.constant 0 : i32
    return %arg2, %arg1 : i32, i32
  }
  func.func @transform_2(%arg0: i32, %arg1: i32, %arg2: i32) -> (i32, i32) {
    %c0_i32 = arith.constant 0 : i32
    %c0_i32_0 = arith.constant 0 : i32
    return %c0_i32, %arg1 : i32, i32
  }
  func.func @transform_3(%arg0: i32, %arg1: i32, %arg2: i32) -> (i32, i32) {
    %c0_i32 = arith.constant 0 : i32
    return %arg0, %arg1 : i32, i32
  }
}

</mosaic_0001>

<llo_original>
// kernel: tpu_custom_call.1
$region0: #{tpu_custom_call.1}
  #allocation0 [shape = 'u32[]', space=smem, size = 0x4, offset = 0x4, fixed_abs, tag = 'smem constant byte address 0x4 - core index']
  #allocation1 [shape = 'u32[144,128]{1,0:T(1,128)}', space=vmem, size = 0x12000, scoped, tag = 'internal scratch']
  #allocation2 [shape = 'f32[16,96]{1,0:T(8,128)}', space=vmem, size = 0x2000, scoped, tag = 'scratch operand']
  %s0 = inlined_call_operand.hbm [shape: f32[16,32], index: 0, kind: input, shape index: {}]
  %s1 = inlined_call_operand.hbm [shape: f32[32,96], index: 1, kind: input, shape index: {}]
  %s2 = inlined_call_operand.vmem [shape: f32[1,96], index: 2, kind: input, shape index: {}]
  %s3 = inlined_call_operand.hbm [shape: f32[16,96], index: 3, kind: output, shape index: {}]
  %s4 = sld [smem:[#allocation0]]
  $region38: #{tpu_custom_call.1} parent=0
    _
  %s6 = ssub.s32 1, %s4
  %s7 = scalar_select 0, %s6, %s4
  $region1: #{tpu_custom_call.1} parent=0
    #allocation3 [shape = 'u8[8192]{0}', space=vmem, size = 0x2000, scoped, tag = 'input window, operand 0, single buffered']
    #allocation4 [shape = 's32[1]{0}', space=sflag, size = 0x4, scoped, tag = 'scoped memory for tpu_custom_call.1']
    #allocation5 [shape = 's32[1]{0}', space=sflag, size = 0x4, scoped, tag = 'scoped memory for tpu_custom_call.1']
    #allocation6 [shape = 'u8[16384]{0}', space=vmem, size = 0x4000, scoped, tag = 'input window, operand 1, single buffered']
    #allocation7 [shape = 's32[1]{0}', space=sflag, size = 0x4, scoped, tag = 'scoped memory for tpu_custom_call.1']
    #allocation8 [shape = 'u8[8192]{0}', space=vmem, size = 0x2000, scoped, tag = 'output window, operand 0, single buffered']
    %8 = vsyncpa [#allocation4], 0
    %9 = vsyncpa [#allocation7], 0
    %10 = vsyncpa [#allocation5], 0
    // Predicated region
    $region2: #{tpu_custom_call.1} parent=1 // pred_check
      _
    $region3: #{tpu_custom_call.1} parent=1 // pred_check_branch
      %12 = sbr.rel (0) target = $region5
    $region4: #{tpu_custom_call.1} parent=1 // pred_region
      %s14 = ssub.s32 256, 256
      %15 = vsyncadd [#allocation4], %s14
      %s16 = sshll.u32 [#allocation3], 4
      %s17 = int_to_ptr.vmem [resolvable:$true] %s16
      %22 = dma.hbm_to_vmem [thread:$0]  %s0, 256, %s17, [#allocation4], 128, 128, 8
    $region5: #{tpu_custom_call.1} parent=1 // pred_fallthru
      _
    // Predicated region
    $region6: #{tpu_custom_call.1} parent=1 // pred_check
      _
    $region7: #{tpu_custom_call.1} parent=1 // pred_check_branch
      %24 = sbr.rel (0) target = $region9
    $region8: #{tpu_custom_call.1} parent=1 // pred_region
      %s26 = ssub.s32 512, 512
      %27 = vsyncadd [#allocation7], %s26
      %s28 = sshll.u32 [#allocation6], 4
      %s29 = int_to_ptr.vmem [resolvable:$true] %s28
      %34 = dma.hbm_to_vmem [thread:$0]  %s1, 512, %s29, [#allocation7], 128, 128, 8
    $region9: #{tpu_custom_call.1} parent=1 // pred_fallthru
      _
    // Predicated region
    $region10: #{tpu_custom_call.1} parent=1 // pred_check
      _
    $region11: #{tpu_custom_call.1} parent=1 // pred_check_branch
      %36 = sbr.rel (0) target = $region13
    $region12: #{tpu_custom_call.1} parent=1 // pred_region
      _
    $region13: #{tpu_custom_call.1} parent=1 // pred_fallthru
      _
    // Predicated region
    $region14: #{tpu_custom_call.1} parent=1 // pred_check
      _
    $region15: #{tpu_custom_call.1} parent=1 // pred_check_branch
      %38 = sbr.rel (0) target = $region17
    $region16: #{tpu_custom_call.1} parent=1 // pred_region
      %39 = dma.done [#allocation4], 256
    $region17: #{tpu_custom_call.1} parent=1 // pred_fallthru
      _
    // Predicated region
    $region18: #{tpu_custom_call.1} parent=1 // pred_check
      _
    $region19: #{tpu_custom_call.1} parent=1 // pred_check_branch
      %41 = sbr.rel (0) target = $region21
    $region20: #{tpu_custom_call.1} parent=1 // pred_region
      %42 = dma.done [#allocation7], 512
    $region21: #{tpu_custom_call.1} parent=1 // pred_fallthru
      _
    %p43 = scmp.eq.s32.totalorder 0, 0
    // Predicated region
    $region22: #{tpu_custom_call.1} parent=1 // pred_check
      %p44 = pneg %p43
    $region23: #{tpu_custom_call.1} parent=1 // pred_check_branch
      %46 = sbr.rel (%p44) target = $region25
    $region24: #{tpu_custom_call.1} parent=1 // pred_region
      %vm47 = vcmask 785408
      %48 = vst.msk [vmem:[#allocation2] sm:$0xff] %vm47, 0.0
      %49 = vst.msk [vmem:[#allocation2 + $0x8] sm:$0xff] %vm47, 0.0
    $region25: #{tpu_custom_call.1} parent=1 // pred_fallthru
      _
    %v50 = vld [vmem:[#allocation3] sm:$0xff]
    %v51 = vld [vmem:[#allocation3 + $0x8] sm:$0xff]
    %v52 = vld [vmem:[#allocation6] sm:$0xff]
    %v53 = vld [vmem:[#allocation6 + $0x8] sm:$0xff]
    %v54 = vld [vmem:[#allocation6 + $0x10] sm:$0xff]
    %v55 = vld [vmem:[#allocation6 + $0x18] sm:$0xff]
    %v56 = vld [vmem:[#allocation2] sm:$0xff]
    %v57 = vld [vmem:[#allocation2 + $0x8] sm:$0xff]
    %vm58 = vcmask 261120
    %v60 = vsel %vm58, %v50, 0
    %v63 = vsel %vm58, %v51, 0
    %65 = vmatprep.subr.mxu0 0.0
    %66 = vmatpush1.msra.mxu0 0.0
    %67 = vmatprep.subr.mxu0 0.0
    %68 = vmatpush1.msra.mxu0 0.0
    %69 = vmatprep.subr.mxu0 0.0
    %70 = vmatpush1.msra.mxu0 0.0
    %71 = vmatprep.subr.mxu0 0.0
    %72 = vmatpush1.msra.mxu0 0.0
    %73 = vmatprep.subr.mxu0 0.0
    %74 = vmatpush1.msra.mxu0 0.0
    %75 = vmatprep.subr.mxu0 0.0
    %76 = vmatpush1.msra.mxu0 0.0
    %77 = vmatprep.subr.mxu0 0.0
    %78 = vmatpush1.msra.mxu0 0.0
    %79 = vmatprep.subr.mxu0 0.0
    %80 = vmatpush1.msra.mxu0 0.0
    %81 = vmatprep.subr.mxu0 0.0
    %82 = vmatpush1.msra.mxu0 0.0
    %83 = vmatprep.subr.mxu0 0.0
    %84 = vmatpush1.msra.mxu0 0.0
    %85 = vmatprep.subr.mxu0 0.0
    %86 = vmatpush1.msra.mxu0 0.0
    %87 = vmatprep.subr.mxu0 0.0
    %88 = vmatpush1.msra.mxu0 0.0
    %89 = vmatprep.subr.mxu0 0.0
    %90 = vmatpush1.msra.mxu0 %v55
    %91 = vmatprep.subr.mxu0 0.0
    %92 = vmatpush1.msra.mxu0 %v54
    %93 = vmatprep.subr.mxu0 0.0
    %94 = vmatpush1.msra.mxu0 %v53
    %95 = vmatprep.subr.mxu0 0.0
    %96 = vmatpush1.msra.mxu0 %v52
    %97 = vmatprep.subr.mxu0 0.0
    %98 = vmatpush2.msra.mxu0 0.0
    %99 = vmatprep.subr.mxu0 0.0
    %100 = vmatpush2.msra.mxu0 0.0
    %101 = vmatprep.subr.mxu0 0.0
    %102 = vmatpush2.msra.mxu0 0.0
    %103 = vmatprep.subr.mxu0 0.0
    %104 = vmatpush2.msra.mxu0 0.0
    %105 = vmatprep.subr.mxu0 0.0
    %106 = vmatpush2.msra.mxu0 0.0
    %107 = vmatprep.subr.mxu0 0.0
    %108 = vmatpush2.msra.mxu0 0.0
    %109 = vmatprep.subr.mxu0 0.0
    %110 = vmatpush2.msra.mxu0 0.0
    %111 = vmatprep.subr.mxu0 0.0
    %112 = vmatpush2.msra.mxu0 0.0
    %113 = vmatprep.subr.mxu0 0.0
    %114 = vmatpush2.msra.mxu0 0.0
    %115 = vmatprep.subr.mxu0 0.0
    %116 = vmatpush2.msra.mxu0 0.0
    %117 = vmatprep.subr.mxu0 0.0
    %118 = vmatpush2.msra.mxu0 0.0
    %119 = vmatprep.subr.mxu0 0.0
    %120 = vmatpush2.msra.mxu0 0.0
    %121 = vmatprep.subr.mxu0 0.0
    %122 = vmatpush2.msra.mxu0 0.0
    %123 = vmatprep.subr.mxu0 0.0
    %124 = vmatpush2.msra.mxu0 0.0
    %125 = vmatprep.subr.mxu0 0.0
    %126 = vmatpush2.msra.mxu0 0.0
    %127 = vmatprep.subr.mxu0 0.0
    %128 = vmatpush2.msra.mxu0 0.0
    %129 = vmatprep.mubr.f32.mxu0 0.0
    %130 = vmatmul.mubr.f32.gmra.mxu0 %v60
    %v131 = vpop.f32.mrf.mxu0
    %v132 = vadd.f32 0.0, %v131
    %v133 = vpop.f32.mrf.mxu0
    %134 = vmatprep.mubr.f32.mxu0 0.0
    %135 = vmatmul.mubr.f32.gmra.mxu0 %v63
    %v136 = vpop.f32.mrf.mxu0
    %v137 = vadd.f32 0.0, %v136
    %v138 = vpop.f32.mrf.mxu0
    %139 = vdwg.mxu0
    %v140 = vadd.f32 %v56, %v132
    %v141 = vadd.f32 %v57, %v137
    %vm142 = vcmask 785408
    %143 = vst.msk [vmem:[#allocation2] sm:$0xff] %vm142, %v140
    %144 = vst.msk [vmem:[#allocation2 + $0x8] sm:$0xff] %vm142, %v141
    // Predicated region
    $region26: #{tpu_custom_call.1} parent=1 // pred_check
      %p145 = pneg %p43
    $region27: #{tpu_custom_call.1} parent=1 // pred_check_branch
      %147 = sbr.rel (%p145) target = $region29
    $region28: #{tpu_custom_call.1} parent=1 // pred_region
      %v148 = vld [vmem:[#allocation2] sm:$0xff]
      %v149 = vld [vmem:[#allocation2 + $0x8] sm:$0xff]
      %v150 = vld [vmem:[%s2] sm:$0x1]
      %v152 = vlaneseq
      %v153 = vshrl.u32 %v152, 7
      %v154 = vsub.s32 0, %v153
      %v155 = vrot.slane %v150, %v154
      %v157 = vadd.f32 %v148, %v155
      %v158 = vadd.f32 %v149, %v155
      %159 = vst.msk [vmem:[#allocation8] sm:$0xff] %vm142, %v157
      %160 = vst.msk [vmem:[#allocation8 + $0x8] sm:$0xff] %vm142, %v158
    $region29: #{tpu_custom_call.1} parent=1 // pred_fallthru
      _
    // Predicated region
    $region30: #{tpu_custom_call.1} parent=1 // pred_check
      _
    $region31: #{tpu_custom_call.1} parent=1 // pred_check_branch
      %162 = sbr.rel (0) target = $region33
    $region32: #{tpu_custom_call.1} parent=1 // pred_region
      %s164 = ssub.s32 256, 256
      %165 = vsyncadd [#allocation5], %s164
      %s166 = sshll.u32 [#allocation8], 4
      %s167 = int_to_ptr.vmem [resolvable:$true] %s166
      %172 = dma.vmem_to_hbm [thread:$0]  %s167, 256, %s3, [#allocation5], 128, 128, 8
    $region33: #{tpu_custom_call.1} parent=1 // pred_fallthru
      _
    // Predicated region
    $region34: #{tpu_custom_call.1} parent=1 // pred_check
      _
    $region35: #{tpu_custom_call.1} parent=1 // pred_check_branch
      %174 = sbr.rel (0) target = $region37
    $region36: #{tpu_custom_call.1} parent=1 // pred_region
      %175 = dma.done [#allocation5], 256
    $region37: #{tpu_custom_call.1} parent=1 // pred_fallthru
      _
    %176 = vsyncpa [#allocation4], 1
    %177 = vsyncpa [#allocation7], 1
    %178 = vsyncpa [#allocation5], 1

</llo_original>
